<compile_context>
chip_gen: v5e
topology: v5e:2x2
jax: 0.10.0
libtpu: 0.0.40
codegen_flags: <defaults>
</compile_context>

<pallas_src>
import jax
import jax.numpy as jnp
from jax.experimental import pallas as pl
from jax.experimental.pallas import tpu as pltpu


def intent_selector_kernel(x_ref, w1_ref, b1_ref, w2_ref, b2_ref, o_ref):
    # Layer 1: x @ W1 + b1, ReLU  (MXU matmul, f32 accumulation, VPU max)
    h = jnp.dot(x_ref[...], w1_ref[...], preferred_element_type=jnp.float32)
    h = jnp.maximum(h + b1_ref[...], 0.0)
    # Layer 2: h @ W2 + b2  (tiny 64->3 matmul; flops negligible, keep on MXU)
    out = jnp.dot(h, w2_ref[...], preferred_element_type=jnp.float32)
    o_ref[...] = (out + b2_ref[...]).astype(o_ref.dtype)


def intent_selector(x, w1, b1, w2, b2, *, block_b=512, input_dtype=None):
    """x: (B, E), w1: (E, 64), b1: (1, 64), w2: (64, 3), b2: (1, 3) -> (B, 3).

    block_b:     batch tile (multiple of 8); weights stay resident across tiles.
    input_dtype: optionally cast x and w1 (e.g. jnp.bfloat16) to halve the
                 dominant HBM read stream; accumulation stays f32.
    """
    assert block_b % 8 == 0, "block_b must be a multiple of 8 (sublane tiling)"
    B, E = x.shape
    H = w1.shape[1]
    n_out = w2.shape[1]

    if input_dtype is not None:
        x = x.astype(input_dtype)
        w1 = w1.astype(input_dtype)
    # Second-layer params and biases are tiny; keep them in f32.
    b1 = b1.astype(jnp.float32)
    w2 = w2.astype(jnp.float32)
    b2 = b2.astype(jnp.float32)

    # Tile the batch dim. If B is small, use a single full block (satisfies the
    # (8,128) rule because block == full array); otherwise tile with TB rows and
    # let Pallas mask the (row-independent) remainder block.
    if B <= block_b:
        tb = B
    else:
        tb = block_b
    grid = (pl.cdiv(B, tb),)

    out_shape = jax.ShapeDtypeStruct((B, n_out), jnp.float32)

    return pl.pallas_call(
        intent_selector_kernel,
        out_shape=out_shape,
        grid=grid,
        in_specs=[
            pl.BlockSpec((tb, E), lambda i: (i, 0)),      # streamed x tiles
            pl.BlockSpec((E, H), lambda i: (0, 0)),       # VMEM-resident W1
            pl.BlockSpec((1, H), lambda i: (0, 0)),       # VMEM-resident b1
            pl.BlockSpec((H, n_out), lambda i: (0, 0)),   # VMEM-resident W2
            pl.BlockSpec((1, n_out), lambda i: (0, 0)),   # VMEM-resident b2
        ],
        out_specs=pl.BlockSpec((tb, n_out), lambda i: (i, 0)),
        compiler_params=pltpu.CompilerParams(
            dimension_semantics=("parallel",),            # v7x megacore split
        ),
    )(x, w1, b1, w2, b2)


def init_params(key, utter_embed_size, hidden=64, n_intents=3):
    """Deterministic synthetic parameters (PyTorch-Linear shapes, pre-transposed)."""
    k1, k2, k3, k4 = jax.random.split(key, 4)
    # nn.Linear(E, 64): weight (64, E), bias (64,)  -> store as (E, 64), (1, 64)
    w1 = jax.random.normal(k1, (utter_embed_size, hidden), jnp.float32) * 0.05
    b1 = jax.random.normal(k2, (1, hidden), jnp.float32) * 0.05
    # nn.Linear(64, 3): weight (3, 64), bias (3,)   -> store as (64, 3), (1, 3)
    w2 = jax.random.normal(k3, (hidden, n_intents), jnp.float32) * 0.05
    b2 = jax.random.normal(k4, (1, n_intents), jnp.float32) * 0.05
    return w1, b1, w2, b2


def reference(x, w1, b1, w2, b2):
    h = jnp.maximum(x @ w1 + b1, 0.0)
    return h @ w2 + b2


if __name__ == "__main__":
    utter_embed_size = 32
    key = jax.random.PRNGKey(0)
    k_x, k_p, k_big = jax.random.split(key, 3)
    w1, b1, w2, b2 = init_params(k_p, utter_embed_size)

    # --- Small test (single block, f32, strict tolerance) -------------------
    batch = 8
    x = jax.random.normal(k_x, (batch, utter_embed_size), jnp.float32)
    out = intent_selector(x, w1, b1, w2, b2)
    jax.block_until_ready(out)
    ref = reference(x, w1, b1, w2, b2)
    assert out.shape == (batch, 3)
    assert jnp.allclose(out, ref, atol=1e-5, rtol=1e-5)

    # --- Gridded test (multiple blocks + ragged remainder, f32) -------------
    big_batch = 1040  # 512 + 512 + 16-row remainder block
    x_big = jax.random.normal(k_big, (big_batch, utter_embed_size), jnp.float32)
    out_big = intent_selector(x_big, w1, b1, w2, b2, block_b=512)
    jax.block_until_ready(out_big)
    ref_big = reference(x_big, w1, b1, w2, b2)
    assert out_big.shape == (big_batch, 3)
    assert jnp.allclose(out_big, ref_big, atol=1e-5, rtol=1e-5)

    # --- bf16 input path (halved x/W1 HBM traffic, f32 accumulation) --------
    out_bf16 = intent_selector(x_big, w1, b1, w2, b2, block_b=512,
                               input_dtype=jnp.bfloat16)
    jax.block_until_ready(out_bf16)
    assert jnp.allclose(out_bf16, ref_big, atol=2e-2, rtol=2e-2)

    print("KERNEL_OK")
</pallas_src>

<mosaic_0001>
module attributes {stable_mosaic.version = 11 : i64} {
  func.func @intent_selector_kernel(%arg0: i32, %arg1: memref<8x32xf32, #tpu.memory_space<vmem>>, %arg2: memref<32x64xf32, #tpu.memory_space<vmem>>, %arg3: memref<1x64xf32, #tpu.memory_space<vmem>>, %arg4: memref<64x3xf32, #tpu.memory_space<vmem>>, %arg5: memref<1x3xf32, #tpu.memory_space<vmem>>, %arg6: memref<8x3xf32, #tpu.memory_space<vmem>>) attributes {dimension_semantics = [#tpu.dimension_semantics<parallel>], iteration_bounds = array<i64: 1>, scalar_prefetch = 0 : i64, scratch_operands = 0 : i64, tpu.core_type = #tpu.core_type<tc>, window_params = [{transform_indices = @transform_0, window_bounds = array<i64: 8, 32>}, {pipeline_mode = #tpu.pipeline_mode<synchronous>, transform_indices = @transform_1, window_bounds = array<i64: 32, 64>}, {pipeline_mode = #tpu.pipeline_mode<synchronous>, transform_indices = @transform_2, window_bounds = array<i64: 1, 64>}, {pipeline_mode = #tpu.pipeline_mode<synchronous>, transform_indices = @transform_3, window_bounds = array<i64: 64, 3>}, {pipeline_mode = #tpu.pipeline_mode<synchronous>, transform_indices = @transform_4, window_bounds = array<i64: 1, 3>}, {transform_indices = @transform_5, window_bounds = array<i64: 8, 3>}]} {
    %c0 = arith.constant 0 : index
    %c0_0 = arith.constant 0 : index
    %0 = vector.load %arg1[%c0, %c0_0] : memref<8x32xf32, #tpu.memory_space<vmem>>, vector<8x32xf32>
    %c0_1 = arith.constant 0 : index
    %c0_2 = arith.constant 0 : index
    %1 = vector.load %arg2[%c0_1, %c0_2] : memref<32x64xf32, #tpu.memory_space<vmem>>, vector<32x64xf32>
    %cst = arith.constant dense<0.000000e+00> : vector<8x64xf32>
    %2 = tpu.matmul %0, %1, %cst {dimension_numbers = #tpu.dot_dimension_numbers<[1], [0], [0], [1], [0, 0, 1, 1], [], []>} : vector<8x32xf32>, vector<32x64xf32>, vector<8x64xf32> -> vector<8x64xf32>
    %c0_3 = arith.constant 0 : index
    %c0_4 = arith.constant 0 : index
    %3 = vector.load %arg3[%c0_3, %c0_4] : memref<1x64xf32, #tpu.memory_space<vmem>>, vector<1x64xf32>
    %4 = vector.broadcast %3 : vector<1x64xf32> to vector<8x64xf32>
    %5 = arith.addf %2, %4 : vector<8x64xf32>
    %cst_5 = arith.constant 0.000000e+00 : f32
    %6 = vector.broadcast %cst_5 : f32 to vector<8x64xf32>
    %7 = arith.maximumf %5, %6 : vector<8x64xf32>
    %c0_6 = arith.constant 0 : index
    %c0_7 = arith.constant 0 : index
    %8 = vector.load %arg4[%c0_6, %c0_7] : memref<64x3xf32, #tpu.memory_space<vmem>>, vector<64x3xf32>
    %cst_8 = arith.constant dense<0.000000e+00> : vector<8x3xf32>
    %9 = tpu.matmul %7, %8, %cst_8 {dimension_numbers = #tpu.dot_dimension_numbers<[1], [0], [0], [1], [0, 0, 1, 1], [], []>} : vector<8x64xf32>, vector<64x3xf32>, vector<8x3xf32> -> vector<8x3xf32>
    %c0_9 = arith.constant 0 : index
    %c0_10 = arith.constant 0 : index
    %10 = vector.load %arg5[%c0_9, %c0_10] : memref<1x3xf32, #tpu.memory_space<vmem>>, vector<1x3xf32>
    %11 = vector.broadcast %10 : vector<1x3xf32> to vector<8x3xf32>
    %12 = arith.addf %9, %11 : vector<8x3xf32>
    %c0_11 = arith.constant 0 : index
    %c0_12 = arith.constant 0 : index
    %13 = vector.load %arg6[%c0_11, %c0_12] : memref<8x3xf32, #tpu.memory_space<vmem>>, vector<8x3xf32>
    tpu.vector_store %arg6[%c0_11, %c0_12], %12 {strides = array<i32>} : memref<8x3xf32, #tpu.memory_space<vmem>>, vector<8x3xf32>,
    return
  }
  func.func @transform_0(%arg0: i32) -> (i32, i32) {
    %c0_i32 = arith.constant 0 : i32
    %c0_i32_0 = arith.constant 0 : i32
    return %arg0, %c0_i32 : i32, i32
  }
  func.func @transform_1(%arg0: i32) -> (i32, i32) {
    %c0_i32 = arith.constant 0 : i32
    %c0_i32_0 = arith.constant 0 : i32
    %c0_i32_1 = arith.constant 0 : i32
    return %c0_i32, %c0_i32_0 : i32, i32
  }
  func.func @transform_2(%arg0: i32) -> (i32, i32) {
    %c0_i32 = arith.constant 0 : i32
    %c0_i32_0 = arith.constant 0 : i32
    %c0_i32_1 = arith.constant 0 : i32
    return %c0_i32, %c0_i32_0 : i32, i32
  }
  func.func @transform_3(%arg0: i32) -> (i32, i32) {
    %c0_i32 = arith.constant 0 : i32
    %c0_i32_0 = arith.constant 0 : i32
    %c0_i32_1 = arith.constant 0 : i32
    return %c0_i32, %c0_i32_0 : i32, i32
  }
  func.func @transform_4(%arg0: i32) -> (i32, i32) {
    %c0_i32 = arith.constant 0 : i32
    %c0_i32_0 = arith.constant 0 : i32
    %c0_i32_1 = arith.constant 0 : i32
    return %c0_i32, %c0_i32_0 : i32, i32
  }
  func.func @transform_5(%arg0: i32) -> (i32, i32) {
    %c0_i32 = arith.constant 0 : i32
    %c0_i32_0 = arith.constant 0 : i32
    return %arg0, %c0_i32 : i32, i32
  }
}

</mosaic_0001>

<llo_original>
// kernel: tpu_custom_call.1
$region0: #{tpu_custom_call.1}
  #allocation0 [shape = 'u32[]', space=smem, size = 0x4, offset = 0x4, fixed_abs, tag = 'smem constant byte address 0x4 - core index']
  #allocation1 [shape = 'u32[72,128]{1,0:T(1,128)}', space=vmem, size = 0x9000, scoped, tag = 'internal scratch']
  %s0 = inlined_call_operand.vmem [shape: f32[8,32], index: 0, kind: input, shape index: {}]
  %s1 = inlined_call_operand.vmem [shape: f32[32,64], index: 1, kind: input, shape index: {}]
  %s2 = inlined_call_operand.vmem [shape: f32[1,64], index: 2, kind: input, shape index: {}]
  %s3 = inlined_call_operand.vmem [shape: f32[64,3], index: 3, kind: input, shape index: {}]
  %s4 = inlined_call_operand.vmem [shape: f32[1,3], index: 4, kind: input, shape index: {}]
  %s5 = inlined_call_operand.vmem [shape: f32[8,3], index: 5, kind: output, shape index: {}]
  %s6 = sld [smem:[#allocation0]]
  $region30: #{tpu_custom_call.1} parent=0
    _
  %s8 = ssub.s32 1, %s6
  %s9 = scalar_select 0, %s8, %s6
  // Predicated region
  $region2: #{tpu_custom_call.1} parent=0 // pred_check
    _
  $region3: #{tpu_custom_call.1} parent=0 // pred_check_branch
    %11 = sbr.rel (0) target = $region5
  $region4: #{tpu_custom_call.1} parent=0 // pred_region
    _
  $region5: #{tpu_custom_call.1} parent=0 // pred_fallthru
    _
  // Predicated region
  $region6: #{tpu_custom_call.1} parent=0 // pred_check
    _
  $region7: #{tpu_custom_call.1} parent=0 // pred_check_branch
    %13 = sbr.rel (0) target = $region9
  $region8: #{tpu_custom_call.1} parent=0 // pred_region
    _
  $region9: #{tpu_custom_call.1} parent=0 // pred_fallthru
    _
  // Predicated region
  $region10: #{tpu_custom_call.1} parent=0 // pred_check
    _
  $region11: #{tpu_custom_call.1} parent=0 // pred_check_branch
    %15 = sbr.rel (0) target = $region13
  $region12: #{tpu_custom_call.1} parent=0 // pred_region
    _
  $region13: #{tpu_custom_call.1} parent=0 // pred_fallthru
    _
  // Predicated region
  $region14: #{tpu_custom_call.1} parent=0 // pred_check
    _
  $region15: #{tpu_custom_call.1} parent=0 // pred_check_branch
    %17 = sbr.rel (0) target = $region17
  $region16: #{tpu_custom_call.1} parent=0 // pred_region
    _
  $region17: #{tpu_custom_call.1} parent=0 // pred_fallthru
    _
  // Predicated region
  $region18: #{tpu_custom_call.1} parent=0 // pred_check
    _
  $region19: #{tpu_custom_call.1} parent=0 // pred_check_branch
    %19 = sbr.rel (0) target = $region21
  $region20: #{tpu_custom_call.1} parent=0 // pred_region
    _
  $region21: #{tpu_custom_call.1} parent=0 // pred_fallthru
    _
  %v20 = vld [vmem:[%s0] sm:$0xff]
  %v21 = vld [vmem:[%s1] sm:$0xff]
  %v22 = vld [vmem:[%s1 + $0x8] sm:$0xff]
  %v23 = vld [vmem:[%s1 + $0x10] sm:$0xff]
  %v24 = vld [vmem:[%s1 + $0x18] sm:$0xff]
  %v25 = vld [vmem:[%s2] sm:$0x1]
  %v27 = vperm.slane %v25, 0
  %vm29 = vcmask 261120
  %v31 = vsel %vm29, %v20, 0
  %33 = vmatpush.msra.mxu0 0.0
  %34 = vmatpush.msra.mxu0 0.0
  %35 = vmatpush.msra.mxu0 0.0
  %36 = vmatpush.msra.mxu0 0.0
  %37 = vmatpush.msra.mxu0 0.0
  %38 = vmatpush.msra.mxu0 0.0
  %39 = vmatpush.msra.mxu0 0.0
  %40 = vmatpush.msra.mxu0 0.0
  %41 = vmatpush.msra.mxu0 0.0
  %42 = vmatpush.msra.mxu0 0.0
  %43 = vmatpush.msra.mxu0 0.0
  %44 = vmatpush.msra.mxu0 0.0
  %45 = vmatpush.msra.mxu0 %v24
  %46 = vmatpush.msra.mxu0 %v23
  %47 = vmatpush.msra.mxu0 %v22
  %48 = vmatpush.msra.mxu0 %v21
  %49 = vmatmul.f32.gmra.mxu0 %v31
  %v50 = vpop.f32.mrf.mxu0
  %v51 = vadd.f32 %v27, %v50
  %52 = vdwg.mxu0
  %v53 = vmax.f32 %v51, 0.0
  %v54 = vld [vmem:[%s3] sm:$0xff]
  %v55 = vld [vmem:[%s3 + $0x8] sm:$0xff]
  %v56 = vld [vmem:[%s3 + $0x10] sm:$0xff]
  %v57 = vld [vmem:[%s3 + $0x18] sm:$0xff]
  %v58 = vld [vmem:[%s3 + $0x20] sm:$0xff]
  %v59 = vld [vmem:[%s3 + $0x28] sm:$0xff]
  %v60 = vld [vmem:[%s3 + $0x30] sm:$0xff]
  %v61 = vld [vmem:[%s3 + $0x38] sm:$0xff]
  %v62 = vld [vmem:[%s4] sm:$0x1]
  %v64 = vperm.slane %v62, 0
  %vm66 = vcmask 523264
  %v68 = vsel %vm66, %v53, 0
  %70 = vmatpush.msra.mxu0 0.0
  %71 = vmatpush.msra.mxu0 0.0
  %72 = vmatpush.msra.mxu0 0.0
  %73 = vmatpush.msra.mxu0 0.0
  %74 = vmatpush.msra.mxu0 0.0
  %75 = vmatpush.msra.mxu0 0.0
  %76 = vmatpush.msra.mxu0 0.0
  %77 = vmatpush.msra.mxu0 0.0
  %78 = vmatpush.msra.mxu0 %v61
  %79 = vmatpush.msra.mxu0 %v60
  %80 = vmatpush.msra.mxu0 %v59
  %81 = vmatpush.msra.mxu0 %v58
  %82 = vmatpush.msra.mxu0 %v57
  %83 = vmatpush.msra.mxu0 %v56
  %84 = vmatpush.msra.mxu0 %v55
  %85 = vmatpush.msra.mxu0 %v54
  %86 = vmatmul.f32.gmra.mxu0 %v68
  %v87 = vpop.f32.mrf.mxu0
  %v88 = vadd.f32 %v64, %v87
  %89 = vdwg.mxu0
  %vm90 = vcmask 23552
  %91 = vst.msk [vmem:[%s5] sm:$0xff] %vm90, %v88
  // Predicated region
  $region22: #{tpu_custom_call.1} parent=0 // pred_check
    _
  $region23: #{tpu_custom_call.1} parent=0 // pred_check_branch
    %93 = sbr.rel (0) target = $region25
  $region24: #{tpu_custom_call.1} parent=0 // pred_region
    _
  $region25: #{tpu_custom_call.1} parent=0 // pred_fallthru
    _
  // Predicated region
  $region26: #{tpu_custom_call.1} parent=0 // pred_check
    _
  $region27: #{tpu_custom_call.1} parent=0 // pred_check_branch
    %95 = sbr.rel (0) target = $region29
  $region28: #{tpu_custom_call.1} parent=0 // pred_region
    _
  $region29: #{tpu_custom_call.1} parent=0 // pred_fallthru
    _

</llo_original>
